<compile_context>
chip_gen: v5e
topology: v5e:2x2
jax: 0.10.0
libtpu: 0.0.40
codegen_flags: <defaults>
</compile_context>

<pallas_src>
import math

import jax
import jax.numpy as jnp
from jax.experimental import pallas as pl
from jax.experimental.pallas import tpu as pltpu


LANE = 128  # TPU lane width (last dim)


def _round_up(n, m):
    return (n + m - 1) // m * m


def _sublane(dtype):
    # Sub-32-bit dtypes pack along sublanes: bf16 -> 16 rows / vreg, int8 -> 32.
    return {4: 8, 2: 16, 1: 32}.get(jnp.dtype(dtype).itemsize, 8)


def _feature_multiple(d):
    """Round large feature dims to 256 (full-width v6e/v7x MXU) when the extra
    padding is small (<= 12.5% over the 128-rounded size); otherwise 128."""
    if d >= 256 and _round_up(d, 256) <= (_round_up(d, 128) * 9) // 8:
        return 256
    return LANE


def _vmem_capacity_bytes():
    try:
        cap = int(pltpu.get_tpu_info().vmem_capacity_bytes)
        if cap > 0:
            return cap
    except Exception:
        pass
    return 64 << 20  # conservative default (v7x-sized)


def _choose_tile_m(batch, sublane, vmem_cap):
    """Large sublane-aligned batch tile.

    * padded batch <= 256 -> single grid step (per-step overhead ~0.35us; an
      8-row tile uses <4% of the MXU, so splitting tiny batches is pure loss),
    * otherwise split into an even number of steps (keeps both v7x TensorCores
      busy), each tile >= 128 rows, capped at 512 (64 MiB VMEM) / 1024 (128 MiB).
    """
    b = _round_up(max(batch, 1), sublane)
    if b <= 256:
        return b
    max_tile = 1024 if vmem_cap > (96 << 20) else 512
    steps = max(2, -(-b // max_tile))
    if steps % 2:
        steps += 1
    tile = _round_up(-(-b // steps), sublane)
    return max(tile, 128)


# --------------------------------------------------------------------------
# Parameter preparation (run ONCE, outside the per-call hot path)
# --------------------------------------------------------------------------
def prepare_dense_nn_params(weights, biases, param_dims, *, compute_dtype=None):
    """Zero-pad (and optionally cast) the parameters once.

    * hidden/output feature axes are padded to lane-dense multiples (128, or
      256 for large dims) so every MXU operand and store is lane-dense,
    * the first layer's input axis is left unpadded (x is streamed unpadded),
    * padding is zero-filled, so the math is exact (padded columns stay zero
      through bias-add and ReLU and are sliced off at the end),
    * compute_dtype=jnp.bfloat16 selects the bf16 MXU path (f32 accumulation
      is kept inside the kernel).
    """
    in_dim = weights[0].shape[0]
    out_dim = weights[-1].shape[1]
    assert out_dim == sum(param_dims)

    dims = [in_dim] + [w.shape[1] for w in weights]
    dims_p = [in_dim] + [_round_up(d, _feature_multiple(d)) for d in dims[1:]]

    weights_p, biases_p = [], []
    for i, (w, b) in enumerate(zip(weights, biases)):
        wdt = compute_dtype if compute_dtype is not None else w.dtype
        wp = jnp.zeros((dims_p[i], dims_p[i + 1]), wdt)
        wp = wp.at[: w.shape[0], : w.shape[1]].set(w.astype(wdt))
        bp = jnp.zeros((1, dims_p[i + 1]), jnp.float32)
        bp = bp.at[0, : b.shape[0]].set(b.astype(jnp.float32))
        weights_p.append(wp)
        biases_p.append(bp)

    return dict(
        weights=weights_p,
        biases=biases_p,
        param_dims=tuple(int(p) for p in param_dims),
        in_dim=int(in_dim),
        out_dim=int(out_dim),
        dims_p=tuple(int(d) for d in dims_p),
    )


# --------------------------------------------------------------------------
# Kernels
# --------------------------------------------------------------------------
def _make_mlp_kernel(n_layers):
    """Fused Linear -> ReLU -> ... -> Linear (ReLU after all but the last).

    Kernel ref order: x, (w1, b1, ..., wL, bL), out.
    """

    def kernel(*refs):
        x_ref, o_ref, wb = refs[0], refs[-1], refs[1:-1]
        h = x_ref[...]
        for i in range(n_layers):
            w = wb[2 * i][...]
            b = wb[2 * i + 1][...]            # (1, N) f32 bias
            # Matmul operands in the weight dtype (bf16 stays bf16 on the MXU),
            # f32 accumulation.
            h = jnp.dot(h.astype(w.dtype), w,
                        preferred_element_type=jnp.float32) + b
            if i < n_layers - 1:
                h = jnp.maximum(h, 0.0)       # torch.nn.ReLU()
        o_ref[...] = h.astype(o_ref.dtype)

    return kernel


def _make_layer_kernel(relu):
    """Single Linear (+ optional ReLU) kernel for the non-resident fallback."""

    def kernel(x_ref, w_ref, b_ref, o_ref):
        acc = jnp.dot(x_ref[...].astype(w_ref.dtype), w_ref[...],
                      preferred_element_type=jnp.float32) + b_ref[...]
        if relu:
            acc = jnp.maximum(acc, 0.0)
        o_ref[...] = acc.astype(o_ref.dtype)

    return kernel


def _fused_call(x_p, params, tile_m, vmem_limit, cost, single_buffer_params):
    weights_p, biases_p = params["weights"], params["biases"]
    n_layers = len(weights_p)
    Bp, in_dim = x_p.shape
    out_dim_p = params["dims_p"][-1]

    wb_kwargs = {"pipeline_mode": pl.Buffered(1)} if single_buffer_params else {}

    in_specs = [pl.BlockSpec((tile_m, in_dim), lambda i: (i, 0))]
    for wp, bp in zip(weights_p, biases_p):
        # Constant index_map -> DMA'd once; Buffered(1) avoids the 2x VMEM copy.
        in_specs.append(pl.BlockSpec(wp.shape, lambda i: (0, 0), **wb_kwargs))
        in_specs.append(pl.BlockSpec(bp.shape, lambda i: (0, 0), **wb_kwargs))
    # TODO(synk): for very large B with tiny out_dim, benchmark a full-dim
    # (masked-store) output block against this lane-padded lane-dense store.
    out_spec = pl.BlockSpec((tile_m, out_dim_p), lambda i: (i, 0))

    flat_args = [x_p]
    for wp, bp in zip(weights_p, biases_p):
        flat_args += [wp, bp]

    return pl.pallas_call(
        _make_mlp_kernel(n_layers),
        out_shape=jax.ShapeDtypeStruct((Bp, out_dim_p), x_p.dtype),
        grid_spec=pltpu.PrefetchScalarGridSpec(
            num_scalar_prefetch=0,
            grid=(Bp // tile_m,),
            in_specs=in_specs,
            out_specs=out_spec,
        ),
        compiler_params=pltpu.CompilerParams(
            dimension_semantics=("parallel",),
            vmem_limit_bytes=int(vmem_limit),
        ),
        cost_estimate=cost,
    )(*flat_args)


def _tiled_layer(h, w, b, relu, tile_m, vmem_limit):
    """Fallback: one Linear layer tiled over (batch, out-features).

    Used when the whole parameter set cannot stay resident in VMEM
    (e.g. large hidden dims on v7x's 64 MiB VMEM)."""
    M, K = h.shape
    N = w.shape[1]
    tn = next((c for c in (512, 256, 128) if N % c == 0), N)
    # TODO(synk): also tile K for extremely large fan-in (the (K, tn) weight
    # block must fit in VMEM); not needed for typical flow-network sizes.
    grid = (M // tile_m, N // tn)
    return pl.pallas_call(
        _make_layer_kernel(relu),
        out_shape=jax.ShapeDtypeStruct((M, N), h.dtype),
        grid_spec=pltpu.PrefetchScalarGridSpec(
            num_scalar_prefetch=0,
            grid=grid,
            in_specs=[pl.BlockSpec((tile_m, K), lambda i, j: (i, 0)),
                      pl.BlockSpec((K, tn), lambda i, j: (0, j)),
                      pl.BlockSpec((1, tn), lambda i, j: (0, j))],
            out_specs=pl.BlockSpec((tile_m, tn), lambda i, j: (i, j)),
        ),
        compiler_params=pltpu.CompilerParams(
            dimension_semantics=("parallel", "parallel"),
            vmem_limit_bytes=int(vmem_limit),
        ),
    )(h, w, b)


# --------------------------------------------------------------------------
# Forward wrapper
# --------------------------------------------------------------------------
def dense_nn_forward(x, params, *, tile_m=None):
    """Forward pass of DenseNN using pre-prepared (padded) parameters.

    x: (..., in_dim).  `params` comes from prepare_dense_nn_params().
    Returns the same structure as DenseNN.forward:
      - single array if output_multiplier == 1 or len(param_dims) == 1
      - otherwise a tuple of arrays, one per param_dims slice.
    """
    weights_p, biases_p = params["weights"], params["biases"]
    dims_p = params["dims_p"]
    in_dim, out_dim = params["in_dim"], params["out_dim"]
    param_dims = params["param_dims"]
    n_layers = len(weights_p)

    leading = x.shape[:-1]
    assert x.shape[-1] == in_dim
    x2 = x.reshape(-1, in_dim)
    B = x2.shape[0]

    sublane = _sublane(x.dtype)
    vmem_cap = _vmem_capacity_bytes() - (2 << 20)  # small headroom
    budget = int(0.9 * vmem_cap)

    if tile_m is None:
        tile_m = _choose_tile_m(B, sublane, vmem_cap)
    tile_m = max(sublane, _round_up(tile_m, sublane))
    tile_req = tile_m

    eb_x = jnp.dtype(x.dtype).itemsize
    param_bytes = sum(w.size * w.dtype.itemsize for w in weights_p) + \
                  sum(b.size * b.dtype.itemsize for b in biases_p)

    def fused_est(tm):
        io = 2 * tm * in_dim * eb_x + 2 * tm * dims_p[-1] * eb_x      # x/out tiles (2-buffered)
        act = tm * max(dims_p[i] + dims_p[i + 1] for i in range(n_layers)) * 4
        return param_bytes + io + act                                 # params single-buffered

    # Shrink the batch tile before giving up on the fully-resident fused kernel.
    t = tile_m
    while fused_est(t) > budget and t > sublane:
        t = max(sublane, _round_up(t // 2, sublane))
    use_fused = fused_est(t) <= budget
    tile_m = t if use_fused else tile_req

    # Batch padding only (no lane-padding of x; its last dim is a full-array block).
    pad_b = (-B) % tile_m
    x_p = jnp.pad(x2, ((0, pad_b), (0, 0))) if pad_b else x2
    Bp = x_p.shape[0]

    if use_fused:
        flops = 2 * Bp * sum(dims_p[i] * dims_p[i + 1] for i in range(n_layers))
        bytes_accessed = Bp * in_dim * eb_x + Bp * dims_p[-1] * eb_x + param_bytes
        cost = pl.CostEstimate(flops=int(flops), transcendentals=0,
                               bytes_accessed=int(bytes_accessed))
        vmem_limit = min(vmem_cap,
                         max(32 << 20, int(1.5 * fused_est(tile_m)) + (4 << 20)))

        out = None
        for single in (True, False):
            try:
                out = _fused_call(x_p, params, tile_m, vmem_limit, cost, single)
                break
            except Exception:
                if not single:
                    raise  # re-raise genuine errors on the default-buffered attempt
    else:
        # Layer-by-layer N-tiled fallback (parameters too large to keep resident).
        h = x_p
        for i, (wp, bp) in enumerate(zip(weights_p, biases_p)):
            h = _tiled_layer(h, wp, bp, relu=(i < n_layers - 1),
                             tile_m=tile_m, vmem_limit=vmem_cap)
        out = h

    # Strip batch padding and output lane padding.
    out = out[:B, :out_dim].reshape(leading + (out_dim,))

    # --- glue: reproduce the param_dims splitting of ConditionalDenseNN._forward ---
    if out_dim == 1 or len(param_dims) == 1:
        return out
    slices, start = [], 0
    for p in param_dims:
        slices.append(out[..., start:start + p])
        start += p
    return tuple(slices)


def dense_nn_apply(x, weights, biases, param_dims, **kwargs):
    """Convenience one-shot wrapper (prepares params every call; prefer
    prepare_dense_nn_params + dense_nn_forward on a hot path)."""
    return dense_nn_forward(x, prepare_dense_nn_params(weights, biases, param_dims),
                            **kwargs)


# --------------------------------------------------------------------------
# Init + pure-JAX reference
# --------------------------------------------------------------------------
def init_dense_nn_params(key, input_dim, hidden_dims, param_dims):
    """torch.nn.Linear default init: U(-1/sqrt(fan_in), 1/sqrt(fan_in))."""
    dims = [input_dim] + list(hidden_dims) + [sum(param_dims)]
    weights, biases = [], []
    for i in range(len(dims) - 1):
        fan_in, fan_out = dims[i], dims[i + 1]
        key, kw, kb = jax.random.split(key, 3)
        bound = 1.0 / math.sqrt(fan_in)
        weights.append(jax.random.uniform(kw, (fan_in, fan_out), jnp.float32,
                                          -bound, bound))
        biases.append(jax.random.uniform(kb, (fan_out,), jnp.float32,
                                         -bound, bound))
    return weights, biases


def dense_nn_reference(x, weights, biases, param_dims):
    """Pure-JAX reference mirroring the PyTorch module."""
    h = x
    for i, (w, b) in enumerate(zip(weights, biases)):
        h = h @ w + b
        if i < len(weights) - 1:
            h = jnp.maximum(h, 0.0)
    out_dim = sum(param_dims)
    if out_dim == 1 or len(param_dims) == 1:
        return h
    slices, start = [], 0
    for p in param_dims:
        slices.append(h[..., start:start + p])
        start += p
    return tuple(slices)


if __name__ == "__main__":
    # DenseNN(input_dim=5, hidden_dims=[32, 32], param_dims=[1, 10, 10])
    input_dim = 5
    hidden_dims = [32, 32]
    param_dims = [1, 10, 10]
    batch = 16

    key = jax.random.PRNGKey(0)
    key, kx = jax.random.split(key)
    x = jax.random.uniform(kx, (batch, input_dim), jnp.float32)

    weights, biases = init_dense_nn_params(key, input_dim, hidden_dims, param_dims)

    # Pad/cast parameters once (off the hot path), then run the fused kernel.
    prepared = prepare_dense_nn_params(weights, biases, param_dims)
    out = dense_nn_forward(x, prepared)
    out = jax.block_until_ready(out)

    ref = dense_nn_reference(x, weights, biases, param_dims)
    for o, r in zip(out, ref):
        assert o.shape == r.shape, (o.shape, r.shape)
        assert float(jnp.max(jnp.abs(o - r))) < 1e-4

    print("KERNEL_OK")
</pallas_src>

<mosaic_0001>
module attributes {stable_mosaic.version = 11 : i64} {
  func.func @kernel(%arg0: i32, %arg1: memref<16x5xf32, #tpu.memory_space<vmem>>, %arg2: memref<5x128xf32, #tpu.memory_space<vmem>>, %arg3: memref<1x128xf32, #tpu.memory_space<vmem>>, %arg4: memref<128x128xf32, #tpu.memory_space<vmem>>, %arg5: memref<1x128xf32, #tpu.memory_space<vmem>>, %arg6: memref<128x128xf32, #tpu.memory_space<vmem>>, %arg7: memref<1x128xf32, #tpu.memory_space<vmem>>, %arg8: memref<16x128xf32, #tpu.memory_space<vmem>>) attributes {dimension_semantics = [#tpu.dimension_semantics<parallel>], iteration_bounds = array<i64: 1>, scalar_prefetch = 0 : i64, scratch_operands = 0 : i64, tpu.core_type = #tpu.core_type<tc>, window_params = [{transform_indices = @transform_0, window_bounds = array<i64: 16, 5>}, {pipeline_mode = #tpu.pipeline_mode<synchronous>, transform_indices = @transform_1, window_bounds = array<i64: 5, 128>}, {pipeline_mode = #tpu.pipeline_mode<synchronous>, transform_indices = @transform_2, window_bounds = array<i64: 1, 128>}, {pipeline_mode = #tpu.pipeline_mode<synchronous>, transform_indices = @transform_3, window_bounds = array<i64: 128, 128>}, {pipeline_mode = #tpu.pipeline_mode<synchronous>, transform_indices = @transform_4, window_bounds = array<i64: 1, 128>}, {pipeline_mode = #tpu.pipeline_mode<synchronous>, transform_indices = @transform_5, window_bounds = array<i64: 128, 128>}, {pipeline_mode = #tpu.pipeline_mode<synchronous>, transform_indices = @transform_6, window_bounds = array<i64: 1, 128>}, {transform_indices = @transform_7, window_bounds = array<i64: 16, 128>}]} {
    %c0 = arith.constant 0 : index
    %c0_0 = arith.constant 0 : index
    %0 = vector.load %arg1[%c0, %c0_0] : memref<16x5xf32, #tpu.memory_space<vmem>>, vector<16x5xf32>
    %c0_1 = arith.constant 0 : index
    %c0_2 = arith.constant 0 : index
    %1 = vector.load %arg2[%c0_1, %c0_2] : memref<5x128xf32, #tpu.memory_space<vmem>>, vector<5x128xf32>
    %c0_3 = arith.constant 0 : index
    %c0_4 = arith.constant 0 : index
    %2 = vector.load %arg3[%c0_3, %c0_4] : memref<1x128xf32, #tpu.memory_space<vmem>>, vector<1x128xf32>
    %cst = arith.constant dense<0.000000e+00> : vector<16x128xf32>
    %3 = tpu.matmul %0, %1, %cst {dimension_numbers = #tpu.dot_dimension_numbers<[1], [0], [0], [1], [0, 0, 1, 1], [], []>} : vector<16x5xf32>, vector<5x128xf32>, vector<16x128xf32> -> vector<16x128xf32>
    %4 = vector.broadcast %2 : vector<1x128xf32> to vector<16x128xf32>
    %5 = arith.addf %3, %4 : vector<16x128xf32>
    %cst_5 = arith.constant 0.000000e+00 : f32
    %6 = vector.broadcast %cst_5 : f32 to vector<16x128xf32>
    %7 = arith.maximumf %5, %6 : vector<16x128xf32>
    %c0_6 = arith.constant 0 : index
    %c0_7 = arith.constant 0 : index
    %8 = vector.load %arg4[%c0_6, %c0_7] : memref<128x128xf32, #tpu.memory_space<vmem>>, vector<128x128xf32>
    %c0_8 = arith.constant 0 : index
    %c0_9 = arith.constant 0 : index
    %9 = vector.load %arg5[%c0_8, %c0_9] : memref<1x128xf32, #tpu.memory_space<vmem>>, vector<1x128xf32>
    %cst_10 = arith.constant dense<0.000000e+00> : vector<16x128xf32>
    %10 = tpu.matmul %7, %8, %cst_10 {dimension_numbers = #tpu.dot_dimension_numbers<[1], [0], [0], [1], [0, 0, 1, 1], [], []>} : vector<16x128xf32>, vector<128x128xf32>, vector<16x128xf32> -> vector<16x128xf32>
    %11 = vector.broadcast %9 : vector<1x128xf32> to vector<16x128xf32>
    %12 = arith.addf %10, %11 : vector<16x128xf32>
    %cst_11 = arith.constant 0.000000e+00 : f32
    %13 = vector.broadcast %cst_11 : f32 to vector<16x128xf32>
    %14 = arith.maximumf %12, %13 : vector<16x128xf32>
    %c0_12 = arith.constant 0 : index
    %c0_13 = arith.constant 0 : index
    %15 = vector.load %arg6[%c0_12, %c0_13] : memref<128x128xf32, #tpu.memory_space<vmem>>, vector<128x128xf32>
    %c0_14 = arith.constant 0 : index
    %c0_15 = arith.constant 0 : index
    %16 = vector.load %arg7[%c0_14, %c0_15] : memref<1x128xf32, #tpu.memory_space<vmem>>, vector<1x128xf32>
    %cst_16 = arith.constant dense<0.000000e+00> : vector<16x128xf32>
    %17 = tpu.matmul %14, %15, %cst_16 {dimension_numbers = #tpu.dot_dimension_numbers<[1], [0], [0], [1], [0, 0, 1, 1], [], []>} : vector<16x128xf32>, vector<128x128xf32>, vector<16x128xf32> -> vector<16x128xf32>
    %18 = vector.broadcast %16 : vector<1x128xf32> to vector<16x128xf32>
    %19 = arith.addf %17, %18 : vector<16x128xf32>
    %c0_17 = arith.constant 0 : index
    %c0_18 = arith.constant 0 : index
    %20 = vector.load %arg8[%c0_17, %c0_18] : memref<16x128xf32, #tpu.memory_space<vmem>>, vector<16x128xf32>
    tpu.vector_store %arg8[%c0_17, %c0_18], %19 {strides = array<i32>} : memref<16x128xf32, #tpu.memory_space<vmem>>, vector<16x128xf32>,
    return
  }
  func.func @transform_0(%arg0: i32) -> (i32, i32) {
    %c0_i32 = arith.constant 0 : i32
    %c0_i32_0 = arith.constant 0 : i32
    return %arg0, %c0_i32 : i32, i32
  }
  func.func @transform_1(%arg0: i32) -> (i32, i32) {
    %c0_i32 = arith.constant 0 : i32
    %c0_i32_0 = arith.constant 0 : i32
    %c0_i32_1 = arith.constant 0 : i32
    return %c0_i32, %c0_i32_0 : i32, i32
  }
  func.func @transform_2(%arg0: i32) -> (i32, i32) {
    %c0_i32 = arith.constant 0 : i32
    %c0_i32_0 = arith.constant 0 : i32
    %c0_i32_1 = arith.constant 0 : i32
    return %c0_i32, %c0_i32_0 : i32, i32
  }
  func.func @transform_3(%arg0: i32) -> (i32, i32) {
    %c0_i32 = arith.constant 0 : i32
    %c0_i32_0 = arith.constant 0 : i32
    %c0_i32_1 = arith.constant 0 : i32
    return %c0_i32, %c0_i32_0 : i32, i32
  }
  func.func @transform_4(%arg0: i32) -> (i32, i32) {
    %c0_i32 = arith.constant 0 : i32
    %c0_i32_0 = arith.constant 0 : i32
    %c0_i32_1 = arith.constant 0 : i32
    return %c0_i32, %c0_i32_0 : i32, i32
  }
  func.func @transform_5(%arg0: i32) -> (i32, i32) {
    %c0_i32 = arith.constant 0 : i32
    %c0_i32_0 = arith.constant 0 : i32
    %c0_i32_1 = arith.constant 0 : i32
    return %c0_i32, %c0_i32_0 : i32, i32
  }
  func.func @transform_6(%arg0: i32) -> (i32, i32) {
    %c0_i32 = arith.constant 0 : i32
    %c0_i32_0 = arith.constant 0 : i32
    %c0_i32_1 = arith.constant 0 : i32
    return %c0_i32, %c0_i32_0 : i32, i32
  }
  func.func @transform_7(%arg0: i32) -> (i32, i32) {
    %c0_i32 = arith.constant 0 : i32
    %c0_i32_0 = arith.constant 0 : i32
    return %arg0, %c0_i32 : i32, i32
  }
}

module attributes {stable_mosaic.version = 11 : i64} {
  func.func @kernel(%arg0: i32, %arg1: memref<16x5xf32, #tpu.memory_space<vmem>>, %arg2: memref<5x128xf32, #tpu.memory_space<vmem>>, %arg3: memref<1x128xf32, #tpu.memory_space<vmem>>, %arg4: memref<128x128xf32, #tpu.memory_space<vmem>>, %arg5: memref<1x128xf32, #tpu.memory_space<vmem>>, %arg6: memref<128x128xf32, #tpu.memory_space<vmem>>, %arg7: memref<1x128xf32, #tpu.memory_space<vmem>>, %arg8: memref<16x128xf32, #tpu.memory_space<vmem>>) attributes {dimension_semantics = [#tpu.dimension_semantics<parallel>], iteration_bounds = array<i64: 1>, scalar_prefetch = 0 : i64, scratch_operands = 0 : i64, tpu.core_type = #tpu.core_type<tc>, window_params = [{transform_indices = @transform_0, window_bounds = array<i64: 16, 5>}, {pipeline_mode = #tpu.pipeline_mode<synchronous>, transform_indices = @transform_1, window_bounds = array<i64: 5, 128>}, {pipeline_mode = #tpu.pipeline_mode<synchronous>, transform_indices = @transform_2, window_bounds = array<i64: 1, 128>}, {pipeline_mode = #tpu.pipeline_mode<synchronous>, transform_indices = @transform_3, window_bounds = array<i64: 128, 128>}, {pipeline_mode = #tpu.pipeline_mode<synchronous>, transform_indices = @transform_4, window_bounds = array<i64: 1, 128>}, {pipeline_mode = #tpu.pipeline_mode<synchronous>, transform_indices = @transform_5, window_bounds = array<i64: 128, 128>}, {pipeline_mode = #tpu.pipeline_mode<synchronous>, transform_indices = @transform_6, window_bounds = array<i64: 1, 128>}, {transform_indices = @transform_7, window_bounds = array<i64: 16, 128>}]} {
    %c0 = arith.constant 0 : index
    %c0_0 = arith.constant 0 : index
    %0 = vector.load %arg1[%c0, %c0_0] : memref<16x5xf32, #tpu.memory_space<vmem>>, vector<16x5xf32>
    %c0_1 = arith.constant 0 : index
    %c0_2 = arith.constant 0 : index
    %1 = vector.load %arg2[%c0_1, %c0_2] : memref<5x128xf32, #tpu.memory_space<vmem>>, vector<5x128xf32>
    %c0_3 = arith.constant 0 : index
    %c0_4 = arith.constant 0 : index
    %2 = vector.load %arg3[%c0_3, %c0_4] : memref<1x128xf32, #tpu.memory_space<vmem>>, vector<1x128xf32>
    %cst = arith.constant dense<0.000000e+00> : vector<16x128xf32>
    %3 = tpu.matmul %0, %1, %cst {dimension_numbers = #tpu.dot_dimension_numbers<[1], [0], [0], [1], [0, 0, 1, 1], [], []>} : vector<16x5xf32>, vector<5x128xf32>, vector<16x128xf32> -> vector<16x128xf32>
    %4 = vector.broadcast %2 : vector<1x128xf32> to vector<16x128xf32>
    %5 = arith.addf %3, %4 : vector<16x128xf32>
    %cst_5 = arith.constant 0.000000e+00 : f32
    %6 = vector.broadcast %cst_5 : f32 to vector<16x128xf32>
    %7 = arith.maximumf %5, %6 : vector<16x128xf32>
    %c0_6 = arith.constant 0 : index
    %c0_7 = arith.constant 0 : index
    %8 = vector.load %arg4[%c0_6, %c0_7] : memref<128x128xf32, #tpu.memory_space<vmem>>, vector<128x128xf32>
    %c0_8 = arith.constant 0 : index
    %c0_9 = arith.constant 0 : index
    %9 = vector.load %arg5[%c0_8, %c0_9] : memref<1x128xf32, #tpu.memory_space<vmem>>, vector<1x128xf32>
    %cst_10 = arith.constant dense<0.000000e+00> : vector<16x128xf32>
    %10 = tpu.matmul %7, %8, %cst_10 {dimension_numbers = #tpu.dot_dimension_numbers<[1], [0], [0], [1], [0, 0, 1, 1], [], []>} : vector<16x128xf32>, vector<128x128xf32>, vector<16x128xf32> -> vector<16x128xf32>
    %11 = vector.broadcast %9 : vector<1x128xf32> to vector<16x128xf32>
    %12 = arith.addf %10, %11 : vector<16x128xf32>
    %cst_11 = arith.constant 0.000000e+00 : f32
    %13 = vector.broadcast %cst_11 : f32 to vector<16x128xf32>
    %14 = arith.maximumf %12, %13 : vector<16x128xf32>
    %c0_12 = arith.constant 0 : index
    %c0_13 = arith.constant 0 : index
    %15 = vector.load %arg6[%c0_12, %c0_13] : memref<128x128xf32, #tpu.memory_space<vmem>>, vector<128x128xf32>
    %c0_14 = arith.constant 0 : index
    %c0_15 = arith.constant 0 : index
    %16 = vector.load %arg7[%c0_14, %c0_15] : memref<1x128xf32, #tpu.memory_space<vmem>>, vector<1x128xf32>
    %cst_16 = arith.constant dense<0.000000e+00> : vector<16x128xf32>
    %17 = tpu.matmul %14, %15, %cst_16 {dimension_numbers = #tpu.dot_dimension_numbers<[1], [0], [0], [1], [0, 0, 1, 1], [], []>} : vector<16x128xf32>, vector<128x128xf32>, vector<16x128xf32> -> vector<16x128xf32>
    %18 = vector.broadcast %16 : vector<1x128xf32> to vector<16x128xf32>
    %19 = arith.addf %17, %18 : vector<16x128xf32>
    %c0_17 = arith.constant 0 : index
    %c0_18 = arith.constant 0 : index
    %20 = vector.load %arg8[%c0_17, %c0_18] : memref<16x128xf32, #tpu.memory_space<vmem>>, vector<16x128xf32>
    tpu.vector_store %arg8[%c0_17, %c0_18], %19 {strides = array<i32>} : memref<16x128xf32, #tpu.memory_space<vmem>>, vector<16x128xf32>,
    return
  }
  func.func @transform_0(%arg0: i32) -> (i32, i32) {
    %c0_i32 = arith.constant 0 : i32
    %c0_i32_0 = arith.constant 0 : i32
    return %arg0, %c0_i32 : i32, i32
  }
  func.func @transform_1(%arg0: i32) -> (i32, i32) {
    %c0_i32 = arith.constant 0 : i32
    %c0_i32_0 = arith.constant 0 : i32
    %c0_i32_1 = arith.constant 0 : i32
    return %c0_i32, %c0_i32_0 : i32, i32
  }
  func.func @transform_2(%arg0: i32) -> (i32, i32) {
    %c0_i32 = arith.constant 0 : i32
    %c0_i32_0 = arith.constant 0 : i32
    %c0_i32_1 = arith.constant 0 : i32
    return %c0_i32, %c0_i32_0 : i32, i32
  }
  func.func @transform_3(%arg0: i32) -> (i32, i32) {
    %c0_i32 = arith.constant 0 : i32
    %c0_i32_0 = arith.constant 0 : i32
    %c0_i32_1 = arith.constant 0 : i32
    return %c0_i32, %c0_i32_0 : i32, i32
  }
  func.func @transform_4(%arg0: i32) -> (i32, i32) {
    %c0_i32 = arith.constant 0 : i32
    %c0_i32_0 = arith.constant 0 : i32
    %c0_i32_1 = arith.constant 0 : i32
    return %c0_i32, %c0_i32_0 : i32, i32
  }
  func.func @transform_5(%arg0: i32) -> (i32, i32) {
    %c0_i32 = arith.constant 0 : i32
    %c0_i32_0 = arith.constant 0 : i32
    %c0_i32_1 = arith.constant 0 : i32
    return %c0_i32, %c0_i32_0 : i32, i32
  }
  func.func @transform_6(%arg0: i32) -> (i32, i32) {
    %c0_i32 = arith.constant 0 : i32
    %c0_i32_0 = arith.constant 0 : i32
    %c0_i32_1 = arith.constant 0 : i32
    return %c0_i32, %c0_i32_0 : i32, i32
  }
  func.func @transform_7(%arg0: i32) -> (i32, i32) {
    %c0_i32 = arith.constant 0 : i32
    %c0_i32_0 = arith.constant 0 : i32
    return %arg0, %c0_i32 : i32, i32
  }
}

</mosaic_0001>

<llo_original>
// kernel: tpu_custom_call.1
$region0: #{tpu_custom_call.1}
  #allocation0 [shape = 'u32[]', space=smem, size = 0x4, offset = 0x4, fixed_abs, tag = 'smem constant byte address 0x4 - core index']
  #allocation1 [shape = 'u32[72,128]{1,0:T(1,128)}', space=vmem, size = 0x9000, scoped, tag = 'internal scratch']
  %s0 = inlined_call_operand.vmem [shape: f32[16,5], index: 0, kind: input, shape index: {}]
  %s1 = inlined_call_operand.vmem [shape: f32[5,128], index: 1, kind: input, shape index: {}]
  %s2 = inlined_call_operand.vmem [shape: f32[1,128], index: 2, kind: input, shape index: {}]
  %s3 = inlined_call_operand.hbm [shape: f32[128,128], index: 3, kind: input, shape index: {}]
  %s4 = inlined_call_operand.vmem [shape: f32[1,128], index: 4, kind: input, shape index: {}]
  %s5 = inlined_call_operand.hbm [shape: f32[128,128], index: 5, kind: input, shape index: {}]
  %s6 = inlined_call_operand.vmem [shape: f32[1,128], index: 6, kind: input, shape index: {}]
  %s7 = inlined_call_operand.hbm [shape: f32[16,128], index: 7, kind: output, shape index: {}]
  %s8 = sld [smem:[#allocation0]]
  $region46: #{tpu_custom_call.1} parent=0
    _
  %s10 = ssub.s32 1, %s8
  %s11 = scalar_select 0, %s10, %s8
  $region1: #{tpu_custom_call.1} parent=0
    #allocation2 [shape = 'u8[65536]{0}', space=vmem, size = 0x10000, scoped, tag = 'input window, operand 3, single buffered']
    #allocation3 [shape = 's32[1]{0}', space=sflag, size = 0x4, scoped, tag = 'scoped memory for tpu_custom_call.1']
    #allocation4 [shape = 's32[1]{0}', space=sflag, size = 0x4, scoped, tag = 'scoped memory for tpu_custom_call.1']
    #allocation5 [shape = 'u8[65536]{0}', space=vmem, size = 0x10000, scoped, tag = 'input window, operand 5, single buffered']
    #allocation6 [shape = 's32[1]{0}', space=sflag, size = 0x4, scoped, tag = 'scoped memory for tpu_custom_call.1']
    #allocation7 [shape = 'u8[8192]{0}', space=vmem, size = 0x2000, scoped, tag = 'output window, operand 0, single buffered']
    %12 = vsyncpa [#allocation3], 0
    %13 = vsyncpa [#allocation6], 0
    %14 = vsyncpa [#allocation4], 0
    // Predicated region
    $region2: #{tpu_custom_call.1} parent=1 // pred_check
      _
    $region3: #{tpu_custom_call.1} parent=1 // pred_check_branch
      %16 = sbr.rel (0) target = $region5
    $region4: #{tpu_custom_call.1} parent=1 // pred_region
      _
    $region5: #{tpu_custom_call.1} parent=1 // pred_fallthru
      _
    // Predicated region
    $region6: #{tpu_custom_call.1} parent=1 // pred_check
      _
    $region7: #{tpu_custom_call.1} parent=1 // pred_check_branch
      %18 = sbr.rel (0) target = $region9
    $region8: #{tpu_custom_call.1} parent=1 // pred_region
      _
    $region9: #{tpu_custom_call.1} parent=1 // pred_fallthru
      _
    // Predicated region
    $region10: #{tpu_custom_call.1} parent=1 // pred_check
      _
    $region11: #{tpu_custom_call.1} parent=1 // pred_check_branch
      %20 = sbr.rel (0) target = $region13
    $region12: #{tpu_custom_call.1} parent=1 // pred_region
      _
    $region13: #{tpu_custom_call.1} parent=1 // pred_fallthru
      _
    // Predicated region
    $region14: #{tpu_custom_call.1} parent=1 // pred_check
      _
    $region15: #{tpu_custom_call.1} parent=1 // pred_check_branch
      %22 = sbr.rel (0) target = $region17
    $region16: #{tpu_custom_call.1} parent=1 // pred_region
      %24 = vsyncadd [#allocation3], 0
      %s25 = sshll.u32 %s3, 4
      %s26 = int_to_ptr.hbm [resolvable:$true] %s25
      %s27 = sshll.u32 [#allocation2], 4
      %s28 = int_to_ptr.vmem [resolvable:$true] %s27
      %33 = dma.hbm_to_vmem [thread:$0]  %s26, 2048, %s28, [#allocation3], 128, 128, 8
    $region17: #{tpu_custom_call.1} parent=1 // pred_fallthru
      _
    // Predicated region
    $region18: #{tpu_custom_call.1} parent=1 // pred_check
      _
    $region19: #{tpu_custom_call.1} parent=1 // pred_check_branch
      %35 = sbr.rel (0) target = $region21
    $region20: #{tpu_custom_call.1} parent=1 // pred_region
      _
    $region21: #{tpu_custom_call.1} parent=1 // pred_fallthru
      _
    // Predicated region
    $region22: #{tpu_custom_call.1} parent=1 // pred_check
      _
    $region23: #{tpu_custom_call.1} parent=1 // pred_check_branch
      %37 = sbr.rel (0) target = $region25
    $region24: #{tpu_custom_call.1} parent=1 // pred_region
      %39 = vsyncadd [#allocation6], 0
      %s40 = sshll.u32 %s5, 4
      %s41 = int_to_ptr.hbm [resolvable:$true] %s40
      %s42 = sshll.u32 [#allocation5], 4
      %s43 = int_to_ptr.vmem [resolvable:$true] %s42
      %48 = dma.hbm_to_vmem [thread:$0]  %s41, 2048, %s43, [#allocation6], 128, 128, 8
    $region25: #{tpu_custom_call.1} parent=1 // pred_fallthru
      _
    // Predicated region
    $region26: #{tpu_custom_call.1} parent=1 // pred_check
      _
    $region27: #{tpu_custom_call.1} parent=1 // pred_check_branch
      %50 = sbr.rel (0) target = $region29
    $region28: #{tpu_custom_call.1} parent=1 // pred_region
      _
    $region29: #{tpu_custom_call.1} parent=1 // pred_fallthru
      _
    // Predicated region
    $region30: #{tpu_custom_call.1} parent=1 // pred_check
      _
    $region31: #{tpu_custom_call.1} parent=1 // pred_check_branch
      %52 = sbr.rel (0) target = $region33
    $region32: #{tpu_custom_call.1} parent=1 // pred_region
      %54 = dma.done [#allocation3], 2048
    $region33: #{tpu_custom_call.1} parent=1 // pred_fallthru
      _
    // Predicated region
    $region34: #{tpu_custom_call.1} parent=1 // pred_check
      _
    $region35: #{tpu_custom_call.1} parent=1 // pred_check_branch
      %56 = sbr.rel (0) target = $region37
    $region36: #{tpu_custom_call.1} parent=1 // pred_region
      %58 = dma.done [#allocation6], 2048
    $region37: #{tpu_custom_call.1} parent=1 // pred_fallthru
      _
    %v59 = vld [vmem:[%s0] sm:$0xff]
    %v60 = vld [vmem:[%s0 + $0x8] sm:$0xff]
    %v61 = vld [vmem:[%s1] sm:$0x1f]
    %v62 = vld [vmem:[%s2] sm:$0x1]
    %v64 = vperm.slane %v62, 0
    %vm66 = vcmask 39936
    %v68 = vsel %vm66, %v59, 0
    %v71 = vsel %vm66, %v60, 0
    %vm73 = vcmask 1044480
    %v75 = vsel %vm73, %v61, 0
    %77 = vmatpush.msra.mxu0 0.0
    %78 = vmatpush.msra.mxu0 0.0
    %79 = vmatpush.msra.mxu0 0.0
    %80 = vmatpush.msra.mxu0 0.0
    %81 = vmatpush.msra.mxu0 0.0
    %82 = vmatpush.msra.mxu0 0.0
    %83 = vmatpush.msra.mxu0 0.0
    %84 = vmatpush.msra.mxu0 0.0
    %85 = vmatpush.msra.mxu0 0.0
    %86 = vmatpush.msra.mxu0 0.0
    %87 = vmatpush.msra.mxu0 0.0
    %88 = vmatpush.msra.mxu0 0.0
    %89 = vmatpush.msra.mxu0 0.0
    %90 = vmatpush.msra.mxu0 0.0
    %91 = vmatpush.msra.mxu0 0.0
    %92 = vmatpush.msra.mxu0 %v75
    %93 = vmatmul.f32.gmra.mxu0 %v68
    %v94 = vpop.f32.mrf.mxu0
    %v95 = vadd.f32 %v64, %v94
    %96 = vmatmul.f32.gmra.mxu0 %v71
    %v97 = vpop.f32.mrf.mxu0
    %v98 = vadd.f32 %v64, %v97
    %99 = vdwg.mxu0
    %v100 = vmax.f32 %v95, 0.0
    %v101 = vmax.f32 %v98, 0.0
    %v102 = vld [vmem:[#allocation2] sm:$0xff]
    %v103 = vld [vmem:[#allocation2 + $0x8] sm:$0xff]
    %v104 = vld [vmem:[#allocation2 + $0x10] sm:$0xff]
    %v105 = vld [vmem:[#allocation2 + $0x18] sm:$0xff]
    %v106 = vld [vmem:[#allocation2 + $0x20] sm:$0xff]
    %v107 = vld [vmem:[#allocation2 + $0x28] sm:$0xff]
    %v108 = vld [vmem:[#allocation2 + $0x30] sm:$0xff]
    %v109 = vld [vmem:[#allocation2 + $0x38] sm:$0xff]
    %v110 = vld [vmem:[#allocation2 + $0x40] sm:$0xff]
    %v111 = vld [vmem:[#allocation2 + $0x48] sm:$0xff]
    %v112 = vld [vmem:[#allocation2 + $0x50] sm:$0xff]
    %v113 = vld [vmem:[#allocation2 + $0x58] sm:$0xff]
    %v114 = vld [vmem:[#allocation2 + $0x60] sm:$0xff]
    %v115 = vld [vmem:[#allocation2 + $0x68] sm:$0xff]
    %v116 = vld [vmem:[#allocation2 + $0x70] sm:$0xff]
    %v117 = vld [vmem:[#allocation2 + $0x78] sm:$0xff]
    %v118 = vld [vmem:[%s4] sm:$0x1]
    %v120 = vperm.slane %v118, 0
    %122 = vmatpush.msra.mxu0 %v117
    %123 = vmatpush.msra.mxu0 %v116
    %124 = vmatpush.msra.mxu0 %v115
    %125 = vmatpush.msra.mxu0 %v114
    %126 = vmatpush.msra.mxu0 %v113
    %127 = vmatpush.msra.mxu0 %v112
    %128 = vmatpush.msra.mxu0 %v111
    %129 = vmatpush.msra.mxu0 %v110
    %130 = vmatpush.msra.mxu0 %v109
    %131 = vmatpush.msra.mxu0 %v108
    %132 = vmatpush.msra.mxu0 %v107
    %133 = vmatpush.msra.mxu0 %v106
    %134 = vmatpush.msra.mxu0 %v105
    %135 = vmatpush.msra.mxu0 %v104
    %136 = vmatpush.msra.mxu0 %v103
    %137 = vmatpush.msra.mxu0 %v102
    %138 = vmatmul.f32.gmra.mxu0 %v100
    %v139 = vpop.f32.mrf.mxu0
    %v140 = vadd.f32 %v120, %v139
    %141 = vmatmul.f32.gmra.mxu0 %v101
    %v142 = vpop.f32.mrf.mxu0
    %v143 = vadd.f32 %v120, %v142
    %144 = vdwg.mxu0
    %v145 = vmax.f32 %v140, 0.0
    %v146 = vmax.f32 %v143, 0.0
    %v147 = vld [vmem:[#allocation5] sm:$0xff]
    %v148 = vld [vmem:[#allocation5 + $0x8] sm:$0xff]
    %v149 = vld [vmem:[#allocation5 + $0x10] sm:$0xff]
    %v150 = vld [vmem:[#allocation5 + $0x18] sm:$0xff]
    %v151 = vld [vmem:[#allocation5 + $0x20] sm:$0xff]
    %v152 = vld [vmem:[#allocation5 + $0x28] sm:$0xff]
    %v153 = vld [vmem:[#allocation5 + $0x30] sm:$0xff]
    %v154 = vld [vmem:[#allocation5 + $0x38] sm:$0xff]
    %v155 = vld [vmem:[#allocation5 + $0x40] sm:$0xff]
    %v156 = vld [vmem:[#allocation5 + $0x48] sm:$0xff]
    %v157 = vld [vmem:[#allocation5 + $0x50] sm:$0xff]
    %v158 = vld [vmem:[#allocation5 + $0x58] sm:$0xff]
    %v159 = vld [vmem:[#allocation5 + $0x60] sm:$0xff]
    %v160 = vld [vmem:[#allocation5 + $0x68] sm:$0xff]
    %v161 = vld [vmem:[#allocation5 + $0x70] sm:$0xff]
    %v162 = vld [vmem:[#allocation5 + $0x78] sm:$0xff]
    %v163 = vld [vmem:[%s6] sm:$0x1]
    %v165 = vperm.slane %v163, 0
    %167 = vmatpush.msra.mxu0 %v162
    %168 = vmatpush.msra.mxu0 %v161
    %169 = vmatpush.msra.mxu0 %v160
    %170 = vmatpush.msra.mxu0 %v159
    %171 = vmatpush.msra.mxu0 %v158
    %172 = vmatpush.msra.mxu0 %v157
    %173 = vmatpush.msra.mxu0 %v156
    %174 = vmatpush.msra.mxu0 %v155
    %175 = vmatpush.msra.mxu0 %v154
    %176 = vmatpush.msra.mxu0 %v153
    %177 = vmatpush.msra.mxu0 %v152
    %178 = vmatpush.msra.mxu0 %v151
    %179 = vmatpush.msra.mxu0 %v150
    %180 = vmatpush.msra.mxu0 %v149
    %181 = vmatpush.msra.mxu0 %v148
    %182 = vmatpush.msra.mxu0 %v147
    %183 = vmatmul.f32.gmra.mxu0 %v145
    %v184 = vpop.f32.mrf.mxu0
    %v185 = vadd.f32 %v165, %v184
    %186 = vmatmul.f32.gmra.mxu0 %v146
    %v187 = vpop.f32.mrf.mxu0
    %v188 = vadd.f32 %v165, %v187
    %189 = vdwg.mxu0
    %190 = vst [vmem:[#allocation7] sm:$0xff] %v185
    %191 = vst [vmem:[#allocation7 + $0x8] sm:$0xff] %v188
    // Predicated region
    $region38: #{tpu_custom_call.1} parent=1 // pred_check
      _
    $region39: #{tpu_custom_call.1} parent=1 // pred_check_branch
      %193 = sbr.rel (0) target = $region41
    $region40: #{tpu_custom_call.1} parent=1 // pred_region
      %195 = vsyncadd [#allocation4], 0
      %s196 = sshll.u32 [#allocation7], 4
      %s197 = int_to_ptr.vmem [resolvable:$true] %s196
      %s198 = sshll.u32 %s7, 4
      %s199 = int_to_ptr.hbm [resolvable:$true] %s198
      %204 = dma.vmem_to_hbm [thread:$0]  %s197, 256, %s199, [#allocation4], 128, 128, 8
    $region41: #{tpu_custom_call.1} parent=1 // pred_fallthru
      _
    // Predicated region
    $region42: #{tpu_custom_call.1} parent=1 // pred_check
      _
    $region43: #{tpu_custom_call.1} parent=1 // pred_check_branch
      %206 = sbr.rel (0) target = $region45
    $region44: #{tpu_custom_call.1} parent=1 // pred_region
      %208 = dma.done [#allocation4], 256
    $region45: #{tpu_custom_call.1} parent=1 // pred_fallthru
      _
    %209 = vsyncpa [#allocation3], 1
    %210 = vsyncpa [#allocation6], 1
    %211 = vsyncpa [#allocation4], 1

// kernel: tpu_custom_call.1
$region0: #{tpu_custom_call.1}
  #allocation0 [shape = 'u32[]', space=smem, size = 0x4, offset = 0x4, fixed_abs, tag = 'smem constant byte address 0x4 - core index']
  #allocation1 [shape = 'u32[72,128]{1,0:T(1,128)}', space=vmem, size = 0x9000, scoped, tag = 'internal scratch']
  %s0 = inlined_call_operand.vmem [shape: f32[16,5], index: 0, kind: input, shape index: {}]
  %s1 = inlined_call_operand.vmem [shape: f32[5,128], index: 1, kind: input, shape index: {}]
  %s2 = inlined_call_operand.vmem [shape: f32[1,128], index: 2, kind: input, shape index: {}]
  %s3 = inlined_call_operand.hbm [shape: f32[128,128], index: 3, kind: input, shape index: {}]
  %s4 = inlined_call_operand.vmem [shape: f32[1,128], index: 4, kind: input, shape index: {}]
  %s5 = inlined_call_operand.hbm [shape: f32[128,128], index: 5, kind: input, shape index: {}]
  %s6 = inlined_call_operand.vmem [shape: f32[1,128], index: 6, kind: input, shape index: {}]
  %s7 = inlined_call_operand.hbm [shape: f32[16,128], index: 7, kind: output, shape index: {}]
  %s8 = sld [smem:[#allocation0]]
  $region46: #{tpu_custom_call.1} parent=0
    _
  %s10 = ssub.s32 1, %s8
  %s11 = scalar_select 0, %s10, %s8
  $region1: #{tpu_custom_call.1} parent=0
    #allocation2 [shape = 'u8[65536]{0}', space=vmem, size = 0x10000, scoped, tag = 'input window, operand 3, single buffered']
    #allocation3 [shape = 's32[1]{0}', space=sflag, size = 0x4, scoped, tag = 'scoped memory for tpu_custom_call.1']
    #allocation4 [shape = 's32[1]{0}', space=sflag, size = 0x4, scoped, tag = 'scoped memory for tpu_custom_call.1']
    #allocation5 [shape = 'u8[65536]{0}', space=vmem, size = 0x10000, scoped, tag = 'input window, operand 5, single buffered']
    #allocation6 [shape = 's32[1]{0}', space=sflag, size = 0x4, scoped, tag = 'scoped memory for tpu_custom_call.1']
    #allocation7 [shape = 'u8[8192]{0}', space=vmem, size = 0x2000, scoped, tag = 'output window, operand 0, single buffered']
    %12 = vsyncpa [#allocation3], 0
    %13 = vsyncpa [#allocation6], 0
    %14 = vsyncpa [#allocation4], 0
    // Predicated region
    $region2: #{tpu_custom_call.1} parent=1 // pred_check
      _
    $region3: #{tpu_custom_call.1} parent=1 // pred_check_branch
      %16 = sbr.rel (0) target = $region5
    $region4: #{tpu_custom_call.1} parent=1 // pred_region
      _
    $region5: #{tpu_custom_call.1} parent=1 // pred_fallthru
      _
    // Predicated region
    $region6: #{tpu_custom_call.1} parent=1 // pred_check
      _
    $region7: #{tpu_custom_call.1} parent=1 // pred_check_branch
      %18 = sbr.rel (0) target = $region9
    $region8: #{tpu_custom_call.1} parent=1 // pred_region
      _
    $region9: #{tpu_custom_call.1} parent=1 // pred_fallthru
      _
    // Predicated region
    $region10: #{tpu_custom_call.1} parent=1 // pred_check
      _
    $region11: #{tpu_custom_call.1} parent=1 // pred_check_branch
      %20 = sbr.rel (0) target = $region13
    $region12: #{tpu_custom_call.1} parent=1 // pred_region
      _
    $region13: #{tpu_custom_call.1} parent=1 // pred_fallthru
      _
    // Predicated region
    $region14: #{tpu_custom_call.1} parent=1 // pred_check
      _
    $region15: #{tpu_custom_call.1} parent=1 // pred_check_branch
      %22 = sbr.rel (0) target = $region17
    $region16: #{tpu_custom_call.1} parent=1 // pred_region
      %24 = vsyncadd [#allocation3], 0
      %s25 = sshll.u32 %s3, 4
      %s26 = int_to_ptr.hbm [resolvable:$true] %s25
      %s27 = sshll.u32 [#allocation2], 4
      %s28 = int_to_ptr.vmem [resolvable:$true] %s27
      %33 = dma.hbm_to_vmem [thread:$0]  %s26, 2048, %s28, [#allocation3], 128, 128, 8
    $region17: #{tpu_custom_call.1} parent=1 // pred_fallthru
      _
    // Predicated region
    $region18: #{tpu_custom_call.1} parent=1 // pred_check
      _
    $region19: #{tpu_custom_call.1} parent=1 // pred_check_branch
      %35 = sbr.rel (0) target = $region21
    $region20: #{tpu_custom_call.1} parent=1 // pred_region
      _
    $region21: #{tpu_custom_call.1} parent=1 // pred_fallthru
      _
    // Predicated region
    $region22: #{tpu_custom_call.1} parent=1 // pred_check
      _
    $region23: #{tpu_custom_call.1} parent=1 // pred_check_branch
      %37 = sbr.rel (0) target = $region25
    $region24: #{tpu_custom_call.1} parent=1 // pred_region
      %39 = vsyncadd [#allocation6], 0
      %s40 = sshll.u32 %s5, 4
      %s41 = int_to_ptr.hbm [resolvable:$true] %s40
      %s42 = sshll.u32 [#allocation5], 4
      %s43 = int_to_ptr.vmem [resolvable:$true] %s42
      %48 = dma.hbm_to_vmem [thread:$0]  %s41, 2048, %s43, [#allocation6], 128, 128, 8
    $region25: #{tpu_custom_call.1} parent=1 // pred_fallthru
      _
    // Predicated region
    $region26: #{tpu_custom_call.1} parent=1 // pred_check
      _
    $region27: #{tpu_custom_call.1} parent=1 // pred_check_branch
      %50 = sbr.rel (0) target = $region29
    $region28: #{tpu_custom_call.1} parent=1 // pred_region
      _
    $region29: #{tpu_custom_call.1} parent=1 // pred_fallthru
      _
    // Predicated region
    $region30: #{tpu_custom_call.1} parent=1 // pred_check
      _
    $region31: #{tpu_custom_call.1} parent=1 // pred_check_branch
      %52 = sbr.rel (0) target = $region33
    $region32: #{tpu_custom_call.1} parent=1 // pred_region
      %54 = dma.done [#allocation3], 2048
    $region33: #{tpu_custom_call.1} parent=1 // pred_fallthru
      _
    // Predicated region
    $region34: #{tpu_custom_call.1} parent=1 // pred_check
      _
    $region35: #{tpu_custom_call.1} parent=1 // pred_check_branch
      %56 = sbr.rel (0) target = $region37
    $region36: #{tpu_custom_call.1} parent=1 // pred_region
      %58 = dma.done [#allocation6], 2048
    $region37: #{tpu_custom_call.1} parent=1 // pred_fallthru
      _
    %v59 = vld [vmem:[%s0] sm:$0xff]
    %v60 = vld [vmem:[%s0 + $0x8] sm:$0xff]
    %v61 = vld [vmem:[%s1] sm:$0x1f]
    %v62 = vld [vmem:[%s2] sm:$0x1]
    %v64 = vperm.slane %v62, 0
    %vm66 = vcmask 39936
    %v68 = vsel %vm66, %v59, 0
    %v71 = vsel %vm66, %v60, 0
    %vm73 = vcmask 1044480
    %v75 = vsel %vm73, %v61, 0
    %77 = vmatpush.msra.mxu0 0.0
    %78 = vmatpush.msra.mxu0 0.0
    %79 = vmatpush.msra.mxu0 0.0
    %80 = vmatpush.msra.mxu0 0.0
    %81 = vmatpush.msra.mxu0 0.0
    %82 = vmatpush.msra.mxu0 0.0
    %83 = vmatpush.msra.mxu0 0.0
    %84 = vmatpush.msra.mxu0 0.0
    %85 = vmatpush.msra.mxu0 0.0
    %86 = vmatpush.msra.mxu0 0.0
    %87 = vmatpush.msra.mxu0 0.0
    %88 = vmatpush.msra.mxu0 0.0
    %89 = vmatpush.msra.mxu0 0.0
    %90 = vmatpush.msra.mxu0 0.0
    %91 = vmatpush.msra.mxu0 0.0
    %92 = vmatpush.msra.mxu0 %v75
    %93 = vmatmul.f32.gmra.mxu0 %v68
    %v94 = vpop.f32.mrf.mxu0
    %v95 = vadd.f32 %v64, %v94
    %96 = vmatmul.f32.gmra.mxu0 %v71
    %v97 = vpop.f32.mrf.mxu0
    %v98 = vadd.f32 %v64, %v97
    %99 = vdwg.mxu0
    %v100 = vmax.f32 %v95, 0.0
    %v101 = vmax.f32 %v98, 0.0
    %v102 = vld [vmem:[#allocation2] sm:$0xff]
    %v103 = vld [vmem:[#allocation2 + $0x8] sm:$0xff]
    %v104 = vld [vmem:[#allocation2 + $0x10] sm:$0xff]
    %v105 = vld [vmem:[#allocation2 + $0x18] sm:$0xff]
    %v106 = vld [vmem:[#allocation2 + $0x20] sm:$0xff]
    %v107 = vld [vmem:[#allocation2 + $0x28] sm:$0xff]
    %v108 = vld [vmem:[#allocation2 + $0x30] sm:$0xff]
    %v109 = vld [vmem:[#allocation2 + $0x38] sm:$0xff]
    %v110 = vld [vmem:[#allocation2 + $0x40] sm:$0xff]
    %v111 = vld [vmem:[#allocation2 + $0x48] sm:$0xff]
    %v112 = vld [vmem:[#allocation2 + $0x50] sm:$0xff]
    %v113 = vld [vmem:[#allocation2 + $0x58] sm:$0xff]
    %v114 = vld [vmem:[#allocation2 + $0x60] sm:$0xff]
    %v115 = vld [vmem:[#allocation2 + $0x68] sm:$0xff]
    %v116 = vld [vmem:[#allocation2 + $0x70] sm:$0xff]
    %v117 = vld [vmem:[#allocation2 + $0x78] sm:$0xff]
    %v118 = vld [vmem:[%s4] sm:$0x1]
    %v120 = vperm.slane %v118, 0
    %122 = vmatpush.msra.mxu0 %v117
    %123 = vmatpush.msra.mxu0 %v116
    %124 = vmatpush.msra.mxu0 %v115
    %125 = vmatpush.msra.mxu0 %v114
    %126 = vmatpush.msra.mxu0 %v113
    %127 = vmatpush.msra.mxu0 %v112
    %128 = vmatpush.msra.mxu0 %v111
    %129 = vmatpush.msra.mxu0 %v110
    %130 = vmatpush.msra.mxu0 %v109
    %131 = vmatpush.msra.mxu0 %v108
    %132 = vmatpush.msra.mxu0 %v107
    %133 = vmatpush.msra.mxu0 %v106
    %134 = vmatpush.msra.mxu0 %v105
    %135 = vmatpush.msra.mxu0 %v104
    %136 = vmatpush.msra.mxu0 %v103
    %137 = vmatpush.msra.mxu0 %v102
    %138 = vmatmul.f32.gmra.mxu0 %v100
    %v139 = vpop.f32.mrf.mxu0
    %v140 = vadd.f32 %v120, %v139
    %141 = vmatmul.f32.gmra.mxu0 %v101
    %v142 = vpop.f32.mrf.mxu0
    %v143 = vadd.f32 %v120, %v142
    %144 = vdwg.mxu0
    %v145 = vmax.f32 %v140, 0.0
    %v146 = vmax.f32 %v143, 0.0
    %v147 = vld [vmem:[#allocation5] sm:$0xff]
    %v148 = vld [vmem:[#allocation5 + $0x8] sm:$0xff]
    %v149 = vld [vmem:[#allocation5 + $0x10] sm:$0xff]
    %v150 = vld [vmem:[#allocation5 + $0x18] sm:$0xff]
    %v151 = vld [vmem:[#allocation5 + $0x20] sm:$0xff]
    %v152 = vld [vmem:[#allocation5 + $0x28] sm:$0xff]
    %v153 = vld [vmem:[#allocation5 + $0x30] sm:$0xff]
    %v154 = vld [vmem:[#allocation5 + $0x38] sm:$0xff]
    %v155 = vld [vmem:[#allocation5 + $0x40] sm:$0xff]
    %v156 = vld [vmem:[#allocation5 + $0x48] sm:$0xff]
    %v157 = vld [vmem:[#allocation5 + $0x50] sm:$0xff]
    %v158 = vld [vmem:[#allocation5 + $0x58] sm:$0xff]
    %v159 = vld [vmem:[#allocation5 + $0x60] sm:$0xff]
    %v160 = vld [vmem:[#allocation5 + $0x68] sm:$0xff]
    %v161 = vld [vmem:[#allocation5 + $0x70] sm:$0xff]
    %v162 = vld [vmem:[#allocation5 + $0x78] sm:$0xff]
    %v163 = vld [vmem:[%s6] sm:$0x1]
    %v165 = vperm.slane %v163, 0
    %167 = vmatpush.msra.mxu0 %v162
    %168 = vmatpush.msra.mxu0 %v161
    %169 = vmatpush.msra.mxu0 %v160
    %170 = vmatpush.msra.mxu0 %v159
    %171 = vmatpush.msra.mxu0 %v158
    %172 = vmatpush.msra.mxu0 %v157
    %173 = vmatpush.msra.mxu0 %v156
    %174 = vmatpush.msra.mxu0 %v155
    %175 = vmatpush.msra.mxu0 %v154
    %176 = vmatpush.msra.mxu0 %v153
    %177 = vmatpush.msra.mxu0 %v152
    %178 = vmatpush.msra.mxu0 %v151
    %179 = vmatpush.msra.mxu0 %v150
    %180 = vmatpush.msra.mxu0 %v149
    %181 = vmatpush.msra.mxu0 %v148
    %182 = vmatpush.msra.mxu0 %v147
    %183 = vmatmul.f32.gmra.mxu0 %v145
    %v184 = vpop.f32.mrf.mxu0
    %v185 = vadd.f32 %v165, %v184
    %186 = vmatmul.f32.gmra.mxu0 %v146
    %v187 = vpop.f32.mrf.mxu0
    %v188 = vadd.f32 %v165, %v187
    %189 = vdwg.mxu0
    %190 = vst [vmem:[#allocation7] sm:$0xff] %v185
    %191 = vst [vmem:[#allocation7 + $0x8] sm:$0xff] %v188
    // Predicated region
    $region38: #{tpu_custom_call.1} parent=1 // pred_check
      _
    $region39: #{tpu_custom_call.1} parent=1 // pred_check_branch
      %193 = sbr.rel (0) target = $region41
    $region40: #{tpu_custom_call.1} parent=1 // pred_region
      %195 = vsyncadd [#allocation4], 0
      %s196 = sshll.u32 [#allocation7], 4
      %s197 = int_to_ptr.vmem [resolvable:$true] %s196
      %s198 = sshll.u32 %s7, 4
      %s199 = int_to_ptr.hbm [resolvable:$true] %s198
      %204 = dma.vmem_to_hbm [thread:$0]  %s197, 256, %s199, [#allocation4], 128, 128, 8
    $region41: #{tpu_custom_call.1} parent=1 // pred_fallthru
      _
    // Predicated region
    $region42: #{tpu_custom_call.1} parent=1 // pred_check
      _
    $region43: #{tpu_custom_call.1} parent=1 // pred_check_branch
      %206 = sbr.rel (0) target = $region45
    $region44: #{tpu_custom_call.1} parent=1 // pred_region
      %208 = dma.done [#allocation4], 256
    $region45: #{tpu_custom_call.1} parent=1 // pred_fallthru
      _
    %209 = vsyncpa [#allocation3], 1
    %210 = vsyncpa [#allocation6], 1
    %211 = vsyncpa [#allocation4], 1

</llo_original>
